<compile_context>
chip_gen: v7x
topology: tpu7x:2x2x1
jax: 0.10.0
libtpu: 0.0.40
codegen_flags: <defaults>
</compile_context>

<pallas_src>
import jax
import jax.numpy as jnp
from jax.experimental import pallas as pl
from jax.experimental.pallas import tpu as pltpu

BN_EPS = 1e-5
_LANE = 128
_SUBLANE = 8


def _round_up(x, m):
    return ((x + m - 1) // m) * m


def _vmem_capacity_bytes():
    try:
        return int(pltpu.get_tpu_info().vmem_capacity_bytes)
    except Exception:
        return 64 << 20  # conservative: v7x per-TensorCore VMEM


def _fused_kernel(x_ref, w_ref, p_ref, o_ref, acc_ref):
    """One (block_n, block_dout) output tile; d_in reduced over grid axis 2."""
    k = pl.program_id(2)

    @pl.when(k == 0)
    def _():
        acc_ref[...] = jnp.zeros_like(acc_ref)

    # Linear: partial x @ W on the MXU with f32 accumulation.
    acc_ref[...] += jnp.dot(x_ref[...], w_ref[...],
                            preferred_element_type=jnp.float32)

    @pl.when(k == pl.num_programs(2) - 1)
    def _():
        bias = p_ref[0:1, :]    # packed rows: 0=bias, 1=bn scale, 2=bn shift
        scale = p_ref[1:2, :]
        shift = p_ref[2:3, :]
        y = jnp.maximum(acc_ref[...] + bias, 0.0)              # bias + ReLU
        o_ref[...] = (y * scale + shift).astype(o_ref.dtype)   # folded BN; Dropout(eval)=id


def simple_linear_layer_init(w, b, gamma, beta, running_mean, running_var, *,
                             compute_dtype=jnp.bfloat16, block_n=256,
                             block_dout=None, vmem_budget_bytes=None):
    """One-time prep: fold BN, pack params, pad+cast W, choose static tiles."""
    d_in, d_out = w.shape
    vmem_cap = _vmem_capacity_bytes()
    if vmem_budget_bytes is None:
        vmem_budget_bytes = vmem_cap - (16 << 20)

    if block_dout is None:
        # Bigger N-tile when VMEM allows (v5e/v6e: 128 MiB); stay modest on v7x.
        block_dout = 1024 if vmem_cap >= (100 << 20) else 512

    # Lane-dense output tiling.
    block_dout = min(block_dout, _round_up(d_out, _LANE))
    d_out_p = _round_up(d_out, block_dout)

    # Choose block_k so double-buffered x/W tiles + out/acc/params fit in VMEM.
    elt = jnp.dtype(compute_dtype).itemsize
    fixed = (2 * block_n * block_dout * 4          # output tile (double-buffered, f32 worst case)
             + block_n * block_dout * 4            # f32 accumulator scratch
             + 2 * _SUBLANE * block_dout * 4)      # packed bias/scale/shift
    per_k = 2 * (block_n + block_dout) * elt       # x + W columns, double-buffered
    d_in_128 = _round_up(d_in, _LANE)
    max_k = max((vmem_budget_bytes - fixed) // per_k, _LANE)
    block_k = max(min(d_in_128, (max_k // _LANE) * _LANE), _LANE)
    d_in_p = _round_up(d_in, block_k)

    # Pad + cast the static weight once (hoisted out of the per-call path).
    w_p = jnp.zeros((d_in_p, d_out_p), compute_dtype).at[:d_in, :d_out].set(
        w.astype(compute_dtype))

    # Fold BatchNorm (running stats): bn(y) = y * scale + shift.
    scale = gamma.astype(jnp.float32) * jax.lax.rsqrt(
        running_var.astype(jnp.float32) + BN_EPS)
    shift = beta.astype(jnp.float32) - running_mean.astype(jnp.float32) * scale

    packed = jnp.zeros((_SUBLANE, d_out_p), jnp.float32)
    packed = packed.at[0, :d_out].set(b.astype(jnp.float32))
    packed = packed.at[1, :d_out].set(scale)
    packed = packed.at[2, :d_out].set(shift)

    return dict(w=w_p, params=packed, d_in=d_in, d_out=d_out,
                d_in_p=d_in_p, d_out_p=d_out_p,
                block_n=block_n, block_dout=block_dout, block_k=block_k,
                compute_dtype=compute_dtype, vmem_cap=vmem_cap)


def simple_linear_layer_forward(x, state):
    """Fused Linear -> ReLU -> BatchNorm1d(eval) -> Dropout(eval). x: [N, D_in]."""
    n, d_in = x.shape
    assert d_in == state["d_in"], "d_in mismatch with init-time weight"
    d_in_p, d_out_p = state["d_in_p"], state["d_out_p"]
    d_out = state["d_out"]
    block_dout, block_k = state["block_dout"], state["block_k"]
    compute_dtype = state["compute_dtype"]

    block_n = min(state["block_n"], _round_up(n, _SUBLANE))
    n_p = _round_up(n, block_n)

    # Keep >= 2 parallel grid steps when possible (v7x has 2 TensorCores/chip).
    if (d_out_p // block_dout) * (n_p // block_n) == 1 and block_n > _SUBLANE:
        block_n = max(_SUBLANE, _round_up(block_n // 2, _SUBLANE))
        n_p = _round_up(n, block_n)

    # Per-call x prep: cast only if needed, pad only if needed.
    x_c = x if x.dtype == compute_dtype else x.astype(compute_dtype)
    if (n_p, d_in_p) != (n, d_in):
        x_c = jnp.pad(x_c, ((0, n_p - n), (0, d_in_p - d_in)))

    grid = (d_out_p // block_dout, n_p // block_n, d_in_p // block_k)

    elt = jnp.dtype(compute_dtype).itemsize
    out_elt = jnp.dtype(x.dtype).itemsize
    vmem_need = (2 * block_n * block_k * elt
                 + 2 * block_k * block_dout * elt
                 + 2 * block_n * block_dout * out_elt
                 + block_n * block_dout * 4
                 + 2 * _SUBLANE * block_dout * 4)
    # Never exceed physical VMEM minus headroom (v7x: 64 MiB per TensorCore).
    vmem_limit = int(min(max(2 * vmem_need, 32 << 20),
                         state["vmem_cap"] - (8 << 20)))

    out_p = pl.pallas_call(
        _fused_kernel,
        out_shape=jax.ShapeDtypeStruct((n_p, d_out_p), x.dtype),
        grid_spec=pltpu.PrefetchScalarGridSpec(
            num_scalar_prefetch=0,
            grid=grid,  # (dout, n, k): W block index is independent of the batch axis
            in_specs=[
                pl.BlockSpec((block_n, block_k), lambda j, i, k: (i, k)),      # x
                pl.BlockSpec((block_k, block_dout), lambda j, i, k: (k, j)),   # W
                pl.BlockSpec((_SUBLANE, block_dout), lambda j, i, k: (0, j)),  # bias/scale/shift
            ],
            out_specs=pl.BlockSpec((block_n, block_dout), lambda j, i, k: (i, j)),
            scratch_shapes=[pltpu.VMEM((block_n, block_dout), jnp.float32)],
        ),
        compiler_params=pltpu.CompilerParams(
            dimension_semantics=("parallel", "parallel", "arbitrary"),
            vmem_limit_bytes=vmem_limit),
    )(x_c, state["w"], state["params"])

    if (n_p, d_out_p) != (n, d_out):
        out_p = out_p[:n, :d_out]
    return out_p


def _reference(x, w, b, gamma, beta, running_mean, running_var):
    y = jnp.maximum(x @ w + b, 0.0)
    y = (y - running_mean) / jnp.sqrt(running_var + BN_EPS) * gamma + beta
    return y  # eval-mode dropout is identity


if __name__ == "__main__":
    key = jax.random.PRNGKey(0)
    n, d_in, d_out = 16, 32, 64

    k_x, k_w, k_b, k_g, k_be, k_m, k_v = jax.random.split(key, 7)

    x = jax.random.normal(k_x, (n, d_in), dtype=jnp.float32)

    # nn.Linear default init: U(-1/sqrt(d_in), 1/sqrt(d_in)); W stored [D_in, D_out].
    bound = 1.0 / (d_in ** 0.5)
    w = jax.random.uniform(k_w, (d_in, d_out), minval=-bound, maxval=bound,
                           dtype=jnp.float32)
    b = jax.random.uniform(k_b, (d_out,), minval=-bound, maxval=bound,
                           dtype=jnp.float32)

    gamma = 1.0 + 0.1 * jax.random.normal(k_g, (d_out,), dtype=jnp.float32)
    beta = 0.1 * jax.random.normal(k_be, (d_out,), dtype=jnp.float32)
    running_mean = 0.1 * jax.random.normal(k_m, (d_out,), dtype=jnp.float32)
    running_var = 1.0 + 0.1 * jax.random.uniform(k_v, (d_out,), dtype=jnp.float32)

    ref = _reference(x, w, b, gamma, beta, running_mean, running_var)

    # f32 compute path: exact-ish, tight tolerance.
    state_f32 = simple_linear_layer_init(w, b, gamma, beta, running_mean,
                                         running_var, compute_dtype=jnp.float32)
    out_f32 = jax.block_until_ready(simple_linear_layer_forward(x, state_f32))
    assert out_f32.shape == (n, d_out)
    assert jnp.allclose(out_f32, ref, atol=1e-5, rtol=1e-5), "f32 mismatch vs reference"

    # Default bf16 compute path (f32 accumulation): looser tolerance.
    state_bf16 = simple_linear_layer_init(w, b, gamma, beta, running_mean,
                                          running_var)
    out_bf16 = jax.block_until_ready(simple_linear_layer_forward(x, state_bf16))
    assert out_bf16.shape == (n, d_out)
    assert jnp.allclose(out_bf16, ref, atol=5e-2, rtol=5e-2), "bf16 mismatch vs reference"

    print("KERNEL_OK")
</pallas_src>

<mosaic_0001>
module attributes {stable_mosaic.version = 11 : i64} {
  func.func @_fused_kernel(%arg0: i32, %arg1: i32, %arg2: i32, %arg3: memref<8x128xf32, #tpu.memory_space<vmem>>, %arg4: memref<128x128xf32, #tpu.memory_space<vmem>>, %arg5: memref<8x128xf32, #tpu.memory_space<vmem>>, %arg6: memref<8x128xf32, #tpu.memory_space<vmem>>, %arg7: memref<8x128xf32, #tpu.memory_space<vmem>>) attributes {dimension_semantics = [#tpu.dimension_semantics<parallel>, #tpu.dimension_semantics<parallel>, #tpu.dimension_semantics<arbitrary>], iteration_bounds = array<i64: 1, 2, 1>, scalar_prefetch = 0 : i64, scratch_operands = 1 : i64, tpu.core_type = #tpu.core_type<tc>, window_params = [{transform_indices = @transform_0, window_bounds = array<i64: 8, 128>}, {transform_indices = @transform_1, window_bounds = array<i64: 128, 128>}, {transform_indices = @transform_2, window_bounds = array<i64: 8, 128>}, {transform_indices = @transform_3, window_bounds = array<i64: 8, 128>}]} {
    %c0_i32 = arith.constant 0 : i32
    %0 = arith.cmpi eq, %arg2, %c0_i32 : i32
    %1 = arith.extui %0 : i1 to i32
    %c0_i32_0 = arith.constant 0 : i32
    %2 = arith.cmpi ne, %1, %c0_i32_0 : i32
    scf.if %2 {
      %cst_10 = arith.constant 0.000000e+00 : f32
      %12 = vector.broadcast %cst_10 : f32 to vector<8x128xf32>
      %c0_11 = arith.constant 0 : index
      %c0_12 = arith.constant 0 : index
      %13 = vector.load %arg7[%c0_11, %c0_12] : memref<8x128xf32, #tpu.memory_space<vmem>>, vector<8x128xf32>
      tpu.vector_store %arg7[%c0_11, %c0_12], %12 {strides = array<i32>} : memref<8x128xf32, #tpu.memory_space<vmem>>, vector<8x128xf32>,
    } else {
    }
    %c0 = arith.constant 0 : index
    %c0_1 = arith.constant 0 : index
    %3 = vector.load %arg7[%c0, %c0_1] : memref<8x128xf32, #tpu.memory_space<vmem>>, vector<8x128xf32>
    %c0_2 = arith.constant 0 : index
    %c0_3 = arith.constant 0 : index
    %4 = vector.load %arg3[%c0_2, %c0_3] : memref<8x128xf32, #tpu.memory_space<vmem>>, vector<8x128xf32>
    %c0_4 = arith.constant 0 : index
    %c0_5 = arith.constant 0 : index
    %5 = vector.load %arg4[%c0_4, %c0_5] : memref<128x128xf32, #tpu.memory_space<vmem>>, vector<128x128xf32>
    %cst = arith.constant dense<0.000000e+00> : vector<8x128xf32>
    %6 = tpu.matmul %4, %5, %cst {dimension_numbers = #tpu.dot_dimension_numbers<[1], [0], [0], [1], [0, 0, 1, 1], [], []>} : vector<8x128xf32>, vector<128x128xf32>, vector<8x128xf32> -> vector<8x128xf32>
    %7 = arith.addf %3, %6 : vector<8x128xf32>
    %c0_6 = arith.constant 0 : index
    %c0_7 = arith.constant 0 : index
    %8 = vector.load %arg7[%c0_6, %c0_7] : memref<8x128xf32, #tpu.memory_space<vmem>>, vector<8x128xf32>
    tpu.vector_store %arg7[%c0_6, %c0_7], %7 {strides = array<i32>} : memref<8x128xf32, #tpu.memory_space<vmem>>, vector<8x128xf32>,
    %c0_i32_8 = arith.constant 0 : i32
    %9 = arith.cmpi eq, %arg2, %c0_i32_8 : i32
    %10 = arith.extui %9 : i1 to i32
    %c0_i32_9 = arith.constant 0 : i32
    %11 = arith.cmpi ne, %10, %c0_i32_9 : i32
    scf.if %11 {
      %c0_10 = arith.constant 0 : index
      %c0_11 = arith.constant 0 : index
      %12 = vector.load %arg5[%c0_10, %c0_11] : memref<8x128xf32, #tpu.memory_space<vmem>>, vector<1x128xf32>
      %c1 = arith.constant 1 : index
      %c0_12 = arith.constant 0 : index
      %13 = vector.load %arg5[%c1, %c0_12] : memref<8x128xf32, #tpu.memory_space<vmem>>, vector<1x128xf32>
      %c2 = arith.constant 2 : index
      %c0_13 = arith.constant 0 : index
      %14 = vector.load %arg5[%c2, %c0_13] : memref<8x128xf32, #tpu.memory_space<vmem>>, vector<1x128xf32>
      %c0_14 = arith.constant 0 : index
      %c0_15 = arith.constant 0 : index
      %15 = vector.load %arg7[%c0_14, %c0_15] : memref<8x128xf32, #tpu.memory_space<vmem>>, vector<8x128xf32>
      %16 = vector.broadcast %12 : vector<1x128xf32> to vector<8x128xf32>
      %17 = arith.addf %15, %16 : vector<8x128xf32>
      %cst_16 = arith.constant 0.000000e+00 : f32
      %18 = vector.broadcast %cst_16 : f32 to vector<8x128xf32>
      %19 = arith.maximumf %17, %18 : vector<8x128xf32>
      %20 = vector.broadcast %13 : vector<1x128xf32> to vector<8x128xf32>
      %21 = arith.mulf %19, %20 : vector<8x128xf32>
      %22 = vector.broadcast %14 : vector<1x128xf32> to vector<8x128xf32>
      %23 = arith.addf %21, %22 : vector<8x128xf32>
      %c0_17 = arith.constant 0 : index
      %c0_18 = arith.constant 0 : index
      %24 = vector.load %arg6[%c0_17, %c0_18] : memref<8x128xf32, #tpu.memory_space<vmem>>, vector<8x128xf32>
      tpu.vector_store %arg6[%c0_17, %c0_18], %23 {strides = array<i32>} : memref<8x128xf32, #tpu.memory_space<vmem>>, vector<8x128xf32>,
    } else {
    }
    return
  }
  func.func @transform_0(%arg0: i32, %arg1: i32, %arg2: i32) -> (i32, i32) {
    %c0_i32 = arith.constant 0 : i32
    return %arg1, %arg2 : i32, i32
  }
  func.func @transform_1(%arg0: i32, %arg1: i32, %arg2: i32) -> (i32, i32) {
    %c0_i32 = arith.constant 0 : i32
    return %arg2, %arg0 : i32, i32
  }
  func.func @transform_2(%arg0: i32, %arg1: i32, %arg2: i32) -> (i32, i32) {
    %c0_i32 = arith.constant 0 : i32
    %c0_i32_0 = arith.constant 0 : i32
    return %c0_i32, %arg0 : i32, i32
  }
  func.func @transform_3(%arg0: i32, %arg1: i32, %arg2: i32) -> (i32, i32) {
    %c0_i32 = arith.constant 0 : i32
    return %arg1, %arg0 : i32, i32
  }
}

</mosaic_0001>

<llo_original>
// kernel: tpu_custom_call.1
$region0: #{tpu_custom_call.1}
  #allocation0 [shape = 'u32[]', space=smem, size = 0x4, offset = 0x4, fixed_abs, tag = 'smem constant byte address 0x4 - core index']
  #allocation1 [shape = 'u32[144,128]{1,0:T(1,128)}', space=vmem, size = 0x12000, scoped, tag = 'internal scratch']
  #allocation2 [shape = 'f32[8,128]{1,0:T(8,128)}', space=vmem, size = 0x1000, scoped, tag = 'scratch operand']
  %s0 = inlined_call_operand.hbm [shape: f32[16,128], index: 0, kind: input, shape index: {}]
  %s1 = inlined_call_operand.hbm [shape: f32[128,128], index: 1, kind: input, shape index: {}]
  %s2 = inlined_call_operand.hbm [shape: f32[8,128], index: 2, kind: input, shape index: {}]
  %s3 = inlined_call_operand.hbm [shape: f32[16,128], index: 3, kind: output, shape index: {}]
  %s4 = sld [smem:[#allocation0]]
  $region65: #{tpu_custom_call.1} parent=0
    _
  %s6 = ssub.s32 1, %s4
  %s7 = scalar_select 0, %s6, %s4
  $region1: #{tpu_custom_call.1} parent=0
    #allocation3 [shape = 'u8[8192]{0}', space=vmem, size = 0x2000, scoped, tag = 'input window, operand 0']
    #allocation4 [shape = 's32[2]{0}', space=sflag, size = 0x8, scoped, tag = 'scoped memory for tpu_custom_call.1']
    #allocation5 [shape = 's32[2]{0}', space=sflag, size = 0x8, scoped, tag = 'scoped memory for tpu_custom_call.1']
    #allocation6 [shape = 'u8[65536]{0}', space=vmem, size = 0x10000, scoped, tag = 'input window, operand 1, single buffered']
    #allocation7 [shape = 's32[1]{0}', space=sflag, size = 0x4, scoped, tag = 'scoped memory for tpu_custom_call.1']
    #allocation8 [shape = 'u8[4096]{0}', space=vmem, size = 0x1000, scoped, tag = 'input window, operand 2, single buffered']
    #allocation9 [shape = 'u8[8192]{0}', space=vmem, size = 0x2000, scoped, tag = 'output window, operand 0']
    %8 = vsyncpa [#allocation4], 0
    %s9 = scalar_lea.sflag [#allocation4], 1
    %10 = vsyncpa %s9, 0
    %11 = vsyncpa [#allocation7], 0
    %12 = vsyncpa [#allocation5], 0
    %s13 = scalar_lea.sflag [#allocation5], 1
    %14 = vsyncpa %s13, 0
    loop: start=0, step=1, limit=4
    $region2: #{tpu_custom_call.1} parent=1 // loop_pre_header
      _
    $region3: #{tpu_custom_call.1} parent=1 // loop_header
      %s16 = sphi 0, %s20
      %p17 = scmp.ge.s32.totalorder %s16, 4
      %s23 = sphi 0, %s42
      %s24 = sphi 0, %s38
      %s25 = sphi 0, %s34
      %s26 = sphi 0, %s23
      %s27 = sphi 0, %s24
      %s28 = sphi 0, %s25
      %s29 = sphi 0, %s26
      %s30 = sphi 0, %s27
      %s31 = sphi 0, %s28
      %s47 = sphi 0, %s49
      %s50 = sphi 0, %s47
      %s51 = sphi 0, %s50
      %s67 = sphi 0, %s51
      %s75 = sphi 0, %s77
      %s78 = sphi 0, %s75
      %s79 = sphi 0, %s78
      %s95 = sphi 0, %s79
      %s101 = sphi 0, %s103
      %s104 = sphi 0, %s101
      %s105 = sphi 0, %s104
      %s121 = sphi 0, %s105
      %s129 = sphi 0, %s131
      %s132 = sphi 0, %s129
      %s133 = sphi 0, %s132
      %s149 = sphi 0, %s133
    $region4: #{tpu_custom_call.1} parent=1 // loop_header_branch
      %19 = sbr.rel (%p17) target = $region8
    $region5: #{tpu_custom_call.1} parent=1 // loop_body
      %s21 = ssub.s32 %s16, 1
      %s22 = ssub.s32 %s16, 2
      %s32 = sadd.s32 1, %s25
      %p33 = scmp.ge.s32.totalorder %s32, 1
      %s34 = scalar_select %p33, 0, %s32
      %s35 = sadd.s32 1, %s24
      %s36 = scalar_select %p33, %s35, %s24
      %p37 = scmp.ge.s32.totalorder %s36, 2
      %s38 = scalar_select %p37, 0, %s36
      %s39 = sadd.s32 1, %s23
      %s40 = scalar_select %p37, %s39, %s23
      %p41 = scmp.ge.s32.totalorder %s40, 1
      %s42 = scalar_select %p41, 0, %s40
      %s43 = ssub.s32 %s24, %s38
      %s44 = ssub.s32 %s25, %s34
      %s45 = sor.u32 %s43, %s44
      %p46 = scmp.eq.s32.totalorder %s45, 0
      %s48 = sadd.s32 %s47, 1
      %s49 = scalar_select %p46, %s47, %s48
      %p52 = pneg %p46
      %p53 = scmp.eq.s32.totalorder %s16, 1
      %p54 = por %p52, %p53
      %p55 = scmp.ne.s32.totalorder %s47, %s50
      %p56 = scmp.eq.s32.totalorder %s16, 0
      %p57 = por %p55, %p56
      %p58 = scmp.ne.s32.totalorder %s47, %s50
      %p59 = scmp.eq.s32.totalorder %s21, 1
      %p60 = por %p58, %p59
      %p61 = scmp.ne.s32.totalorder %s50, %s51
      %p62 = scmp.eq.s32.totalorder %s21, 0
      %p63 = por %p61, %p62
      %p64 = scmp.ne.s32.totalorder %s50, %s51
      %p65 = scmp.eq.s32.totalorder %s22, 1
      %p66 = por %p64, %p65
      %p68 = scmp.ne.s32.totalorder %s51, %s67
      %p69 = scmp.eq.s32.totalorder %s22, 0
      %p70 = por %p68, %p69
      %s71 = ssub.s32 %s25, %s34
      %s72 = ssub.s32 %s23, %s42
      %s73 = sor.u32 %s71, %s72
      %p74 = scmp.eq.s32.totalorder %s73, 0
      %s76 = sadd.s32 %s75, 1
      %s77 = scalar_select %p74, %s75, %s76
      %p80 = pneg %p74
      %p81 = scmp.eq.s32.totalorder %s16, 1
      %p82 = por %p80, %p81
      %p83 = scmp.ne.s32.totalorder %s75, %s78
      %p84 = scmp.eq.s32.totalorder %s16, 0
      %p85 = por %p83, %p84
      %p86 = scmp.ne.s32.totalorder %s75, %s78
      %p87 = scmp.eq.s32.totalorder %s21, 1
      %p88 = por %p86, %p87
      %p89 = scmp.ne.s32.totalorder %s78, %s79
      %p90 = scmp.eq.s32.totalorder %s21, 0
      %p91 = por %p89, %p90
      %p92 = scmp.ne.s32.totalorder %s78, %s79
      %p93 = scmp.eq.s32.totalorder %s22, 1
      %p94 = por %p92, %p93
      %p96 = scmp.ne.s32.totalorder %s79, %s95
      %p97 = scmp.eq.s32.totalorder %s22, 0
      %p98 = por %p96, %p97
      %s99 = ssub.s32 %s23, %s42
      %p100 = scmp.eq.s32.totalorder %s99, 0
      %s102 = sadd.s32 %s101, 1
      %s103 = scalar_select %p100, %s101, %s102
      %p106 = pneg %p100
      %p107 = scmp.eq.s32.totalorder %s16, 1
      %p108 = por %p106, %p107
      %p109 = scmp.ne.s32.totalorder %s101, %s104
      %p110 = scmp.eq.s32.totalorder %s16, 0
      %p111 = por %p109, %p110
      %p112 = scmp.ne.s32.totalorder %s101, %s104
      %p113 = scmp.eq.s32.totalorder %s21, 1
      %p114 = por %p112, %p113
      %p115 = scmp.ne.s32.totalorder %s104, %s105
      %p116 = scmp.eq.s32.totalorder %s21, 0
      %p117 = por %p115, %p116
      %p118 = scmp.ne.s32.totalorder %s104, %s105
      %p119 = scmp.eq.s32.totalorder %s22, 1
      %p120 = por %p118, %p119
      %p122 = scmp.ne.s32.totalorder %s105, %s121
      %p123 = scmp.eq.s32.totalorder %s22, 0
      %p124 = por %p122, %p123
      %s125 = ssub.s32 %s24, %s38
      %s126 = ssub.s32 %s23, %s42
      %s127 = sor.u32 %s125, %s126
      %p128 = scmp.eq.s32.totalorder %s127, 0
      %s130 = sadd.s32 %s129, 1
      %s131 = scalar_select %p128, %s129, %s130
      %p134 = pneg %p128
      %p135 = scmp.eq.s32.totalorder %s16, 1
      %p136 = por %p134, %p135
      %p137 = scmp.ne.s32.totalorder %s129, %s132
      %p138 = scmp.eq.s32.totalorder %s16, 0
      %p139 = por %p137, %p138
      %p140 = scmp.ne.s32.totalorder %s129, %s132
      %p141 = scmp.eq.s32.totalorder %s21, 1
      %p142 = por %p140, %p141
      %p143 = scmp.ne.s32.totalorder %s132, %s133
      %p144 = scmp.eq.s32.totalorder %s21, 0
      %p145 = por %p143, %p144
      %p146 = scmp.ne.s32.totalorder %s132, %s133
      %p147 = scmp.eq.s32.totalorder %s22, 1
      %p148 = por %p146, %p147
      %p150 = scmp.ne.s32.totalorder %s133, %s149
      %p151 = scmp.eq.s32.totalorder %s22, 0
      %p152 = por %p150, %p151
      %p153 = scmp.le.s32.totalorder 1, %s16
      %p154 = scmp.lt.s32.totalorder %s16, 3
      %p155 = pnand %p153, %p154
      %p156 = pneg %p155
      // Predicated region
      $region9: #{tpu_custom_call.1} parent=5 // pred_check
        _
      $region10: #{tpu_custom_call.1} parent=5 // pred_check_branch
        %158 = sbr.rel (%p155) target = $region12
      $region11: #{tpu_custom_call.1} parent=5 // pred_region
        %s159 = ssub.s32 %s16, 1
        // Predicated region
        $region13: #{tpu_custom_call.1} parent=11 // pred_check
          %p160 = pneg %p91
        $region14: #{tpu_custom_call.1} parent=11 // pred_check_branch
          %162 = sbr.rel (%p160) target = $region16
        $region15: #{tpu_custom_call.1} parent=11 // pred_region
          %s163 = smul.u32 16, %s28
          %s165 = ssub.s32 2048, 2048
          %166 = vsyncadd [#allocation7], %s165
          %s167 = sadd.s32 %s26, %s163
          %s168 = smul.addr %s167, 128
          %s169 = scalar_lea.hbm %s1, %s168
          %s170 = sshll.u32 [#allocation6], 4
          %s171 = int_to_ptr.vmem [resolvable:$true] %s170
          %176 = dma.hbm_to_vmem [thread:$0]  %s169, 2048, %s171, [#allocation7], 128, 128, 8
        $region16: #{tpu_custom_call.1} parent=11 // pred_fallthru
          _
        // Predicated region
        $region17: #{tpu_custom_call.1} parent=11 // pred_check
          %p177 = pneg %p117
        $region18: #{tpu_custom_call.1} parent=11 // pred_check_branch
          %179 = sbr.rel (%p177) target = $region20
        $region19: #{tpu_custom_call.1} parent=11 // pred_region
          %s181 = ssub.s32 128, 128
          %182 = vsyncadd [#allocation7], %s181
          %s183 = smul.addr %s26, 128
          %s184 = scalar_lea.hbm %s2, %s183
          %s186 = sshll.u32 [#allocation8], 4
          %s187 = int_to_ptr.vmem [resolvable:$true] %s186
          %189 = dma.hbm_to_vmem [thread:$0]  %s184, 128, %s187, [#allocation7]
        $region20: #{tpu_custom_call.1} parent=11 // pred_fallthru
          _
      $region12: #{tpu_custom_call.1} parent=5 // pred_fallthru
        _
      %p190 = scmp.lt.s32.totalorder %s16, 2
      // Predicated region
      $region21: #{tpu_custom_call.1} parent=5 // pred_check
        %p191 = pneg %p190
      $region22: #{tpu_custom_call.1} parent=5 // pred_check_branch
        %193 = sbr.rel (%p191) target = $region24
      $region23: #{tpu_custom_call.1} parent=5 // pred_region
        // Predicated region
        $region25: #{tpu_custom_call.1} parent=23 // pred_check
          %p194 = pneg %p57
        $region26: #{tpu_custom_call.1} parent=23 // pred_check_branch
          %196 = sbr.rel (%p194) target = $region28
        $region27: #{tpu_custom_call.1} parent=23 // pred_region
          %s197 = sand.u32 %s47, 1
          %s198 = scalar_lea.sflag [#allocation4], %s197
          %s199 = sand.u32 %s47, 1
          %s200 = smul.addr %s199, 8
          %s201 = scalar_lea.vmem [#allocation3], %s200
          %s203 = ssub.s32 128, 128
          %204 = vsyncadd %s198, %s203
          %s205 = sadd.s32 %s25, %s24
          %s206 = smul.addr %s205, 128
          %s207 = scalar_lea.hbm %s0, %s206
          %s209 = sshll.u32 %s201, 4
          %s210 = int_to_ptr.vmem [resolvable:$true] %s209
          %212 = dma.hbm_to_vmem [thread:$0]  %s207, 128, %s210, %s198
        $region28: #{tpu_custom_call.1} parent=23 // pred_fallthru
          _
      $region24: #{tpu_custom_call.1} parent=5 // pred_fallthru
        _
      %p213 = scmp.le.s32.totalorder 1, %s16
      %p214 = scmp.lt.s32.totalorder %s16, 3
      %p215 = pnand %p213, %p214
      %p216 = pneg %p215
      // Predicated region
      $region29: #{tpu_custom_call.1} parent=5 // pred_check
        _
      $region30: #{tpu_custom_call.1} parent=5 // pred_check_branch
        %218 = sbr.rel (%p215) target = $region32
      $region31: #{tpu_custom_call.1} parent=5 // pred_region
        %s219 = ssub.s32 %s16, 1
        %s220 = sand.u32 %s50, 1
        %s221 = scalar_lea.sflag [#allocation4], %s220
        %s222 = sand.u32 %s50, 1
        %s223 = smul.addr %s222, 8
        %s224 = scalar_lea.vmem [#allocation3], %s223
        // Predicated region
        $region33: #{tpu_custom_call.1} parent=31 // pred_check
          %p225 = pneg %p63
        $region34: #{tpu_custom_call.1} parent=31 // pred_check_branch
          %227 = sbr.rel (%p225) target = $region36
        $region35: #{tpu_custom_call.1} parent=31 // pred_region
          %228 = dma.done %s221, 128
        $region36: #{tpu_custom_call.1} parent=31 // pred_fallthru
          _
        // Predicated region
        $region37: #{tpu_custom_call.1} parent=31 // pred_check
          %p229 = pneg %p91
        $region38: #{tpu_custom_call.1} parent=31 // pred_check_branch
          %231 = sbr.rel (%p229) target = $region40
        $region39: #{tpu_custom_call.1} parent=31 // pred_region
          %232 = dma.done [#allocation7], 2048
        $region40: #{tpu_custom_call.1} parent=31 // pred_fallthru
          _
        // Predicated region
        $region41: #{tpu_custom_call.1} parent=31 // pred_check
          %p233 = pneg %p117
        $region42: #{tpu_custom_call.1} parent=31 // pred_check_branch
          %235 = sbr.rel (%p233) target = $region44
        $region43: #{tpu_custom_call.1} parent=31 // pred_region
          %236 = dma.done [#allocation7], 128
        $region44: #{tpu_custom_call.1} parent=31 // pred_fallthru
          _
        %s237 = sand.u32 %s50, 1
        %s238 = scalar_lea.sflag [#allocation4], %s237
        %s239 = sand.u32 %s50, 1
        %s240 = smul.addr %s239, 8
        %s241 = scalar_lea.vmem [#allocation3], %s240
        %p242 = pneg %p63
        %p243 = pneg %p60
        %p244 = pneg %p91
        %p245 = pneg %p88
        %p246 = pneg %p117
        %p247 = pneg %p114
        %p248 = pneg %p145
        %p249 = pneg %p142
        %s250 = sand.u32 %s132, 1
        %s251 = scalar_lea.sflag [#allocation5], %s250
        %s252 = sand.u32 %s132, 1
        %s253 = smul.addr %s252, 8
        %s254 = scalar_lea.vmem [#allocation9], %s253
        %s255 = smul.u32 16, %s28
        %p256 = scmp.eq.s32.totalorder %s28, 0
        // Predicated region
        $region45: #{tpu_custom_call.1} parent=31 // pred_check
          %p257 = pneg %p256
        $region46: #{tpu_custom_call.1} parent=31 // pred_check_branch
          %259 = sbr.rel (%p257) target = $region48
        $region47: #{tpu_custom_call.1} parent=31 // pred_region
          %260 = vst [vmem:[#allocation2] sm:$0xff] 0.0
        $region48: #{tpu_custom_call.1} parent=31 // pred_fallthru
          _
        %v261 = vld [vmem:[#allocation2] sm:$0xff]
        %v262 = vld [vmem:[%s224] sm:$0xff]
        %v263 = vld [vmem:[#allocation6] sm:$0xff]
        %v264 = vld [vmem:[#allocation6 + $0x8] sm:$0xff]
        %v265 = vld [vmem:[#allocation6 + $0x10] sm:$0xff]
        %v266 = vld [vmem:[#allocation6 + $0x18] sm:$0xff]
        %v267 = vld [vmem:[#allocation6 + $0x20] sm:$0xff]
        %v268 = vld [vmem:[#allocation6 + $0x28] sm:$0xff]
        %v269 = vld [vmem:[#allocation6 + $0x30] sm:$0xff]
        %v270 = vld [vmem:[#allocation6 + $0x38] sm:$0xff]
        %v271 = vld [vmem:[#allocation6 + $0x40] sm:$0xff]
        %v272 = vld [vmem:[#allocation6 + $0x48] sm:$0xff]
        %v273 = vld [vmem:[#allocation6 + $0x50] sm:$0xff]
        %v274 = vld [vmem:[#allocation6 + $0x58] sm:$0xff]
        %v275 = vld [vmem:[#allocation6 + $0x60] sm:$0xff]
        %v276 = vld [vmem:[#allocation6 + $0x68] sm:$0xff]
        %v277 = vld [vmem:[#allocation6 + $0x70] sm:$0xff]
        %v278 = vld [vmem:[#allocation6 + $0x78] sm:$0xff]
        %279 = vmatprep.subr.mxu0 0.0
        %280 = vmatpush1.msra.mxu0 %v263
        %281 = vmatprep.subr.mxu0 0.0
        %282 = vmatpush1.msra.mxu0 %v264
        %283 = vmatprep.subr.mxu0 0.0
        %284 = vmatpush1.msra.mxu0 %v265
        %285 = vmatprep.subr.mxu0 0.0
        %286 = vmatpush1.msra.mxu0 %v266
        %287 = vmatprep.subr.mxu0 0.0
        %288 = vmatpush1.msra.mxu0 %v267
        %289 = vmatprep.subr.mxu0 0.0
        %290 = vmatpush1.msra.mxu0 %v268
        %291 = vmatprep.subr.mxu0 0.0
        %292 = vmatpush1.msra.mxu0 %v269
        %293 = vmatprep.subr.mxu0 0.0
        %294 = vmatpush1.msra.mxu0 %v270
        %295 = vmatprep.subr.mxu0 0.0
        %296 = vmatpush1.msra.mxu0 %v271
        %297 = vmatprep.subr.mxu0 0.0
        %298 = vmatpush1.msra.mxu0 %v272
        %299 = vmatprep.subr.mxu0 0.0
        %300 = vmatpush1.msra.mxu0 %v273
        %301 = vmatprep.subr.mxu0 0.0
        %302 = vmatpush1.msra.mxu0 %v274
        %303 = vmatprep.subr.mxu0 0.0
        %304 = vmatpush1.msra.mxu0 %v275
        %305 = vmatprep.subr.mxu0 0.0
        %306 = vmatpush1.msra.mxu0 %v276
        %307 = vmatprep.subr.mxu0 0.0
        %308 = vmatpush1.msra.mxu0 %v277
        %309 = vmatprep.subr.mxu0 0.0
        %310 = vmatpush1.msra.mxu0 %v278
        %311 = vmatprep.subr.mxu0 0.0
        %312 = vmatpush1.msra.mxu0 0.0
        %313 = vmatprep.subr.mxu0 0.0
        %314 = vmatpush1.msra.mxu0 0.0
        %315 = vmatprep.subr.mxu0 0.0
        %316 = vmatpush1.msra.mxu0 0.0
        %317 = vmatprep.subr.mxu0 0.0
        %318 = vmatpush1.msra.mxu0 0.0
        %319 = vmatprep.subr.mxu0 0.0
        %320 = vmatpush1.msra.mxu0 0.0
        %321 = vmatprep.subr.mxu0 0.0
        %322 = vmatpush1.msra.mxu0 0.0
        %323 = vmatprep.subr.mxu0 0.0
        %324 = vmatpush1.msra.mxu0 0.0
        %325 = vmatprep.subr.mxu0 0.0
        %326 = vmatpush1.msra.mxu0 0.0
        %327 = vmatprep.subr.mxu0 0.0
        %328 = vmatpush1.msra.mxu0 0.0
        %329 = vmatprep.subr.mxu0 0.0
        %330 = vmatpush1.msra.mxu0 0.0
        %331 = vmatprep.subr.mxu0 0.0
        %332 = vmatpush1.msra.mxu0 0.0
        %333 = vmatprep.subr.mxu0 0.0
        %334 = vmatpush1.msra.mxu0 0.0
        %335 = vmatprep.subr.mxu0 0.0
        %336 = vmatpush1.msra.mxu0 0.0
        %337 = vmatprep.subr.mxu0 0.0
        %338 = vmatpush1.msra.mxu0 0.0
        %339 = vmatprep.subr.mxu0 0.0
        %340 = vmatpush1.msra.mxu0 0.0
        %341 = vmatprep.subr.mxu0 0.0
        %342 = vmatpush1.msra.mxu0 0.0
        %343 = vmatprep.mubr.f32.mxu0 0.0
        %344 = vmatmul.mubr.f32.gmra.mrb[0].mxu0 %v262
        %v345 = vpop.f32.mrb[0].mxu0
        %v346 = vadd.f32 0.0, %v345
        %v347 = vpop.f32.mrb[0].mxu0
        %348 = vdwg.mxu0
        %v349 = vadd.f32 %v261, %v346
        %350 = vst [vmem:[#allocation2] sm:$0xff] %v349
        // Predicated region
        $region49: #{tpu_custom_call.1} parent=31 // pred_check
          %p351 = pneg %p256
        $region50: #{tpu_custom_call.1} parent=31 // pred_check_branch
          %353 = sbr.rel (%p351) target = $region52
        $region51: #{tpu_custom_call.1} parent=31 // pred_region
          %v354 = vld [vmem:[#allocation8] sm:$0x1]
          %v355 = vld [vmem:[#allocation8 + $0x1] sm:$0x1]
          %v356 = vld [vmem:[#allocation8 + $0x2] sm:$0x1]
          %v357 = vld [vmem:[#allocation2] sm:$0xff]
          %v358 = vlaneseq
          %v359 = vshrl.u32 %v358, 7
          %v360 = vsub.s32 0, %v359
          %v361 = vrot.slane %v354, %v360
          %v362 = vadd.f32 %v357, %v361
          %v363 = vmax.f32 %v362, 0.0
          %v364 = vlaneseq
          %v365 = vshrl.u32 %v364, 7
          %v366 = vsub.s32 0, %v365
          %v367 = vrot.slane %v355, %v366
          %v368 = vmul.f32 %v363, %v367
          %v369 = vlaneseq
          %v370 = vshrl.u32 %v369, 7
          %v371 = vsub.s32 0, %v370
          %v372 = vrot.slane %v356, %v371
          %v373 = vadd.f32 %v368, %v372
          %374 = vst [vmem:[%s254] sm:$0xff] %v373
        $region52: #{tpu_custom_call.1} parent=31 // pred_fallthru
          _
        %s375 = sand.u32 %s132, 1
        %s376 = scalar_lea.sflag [#allocation5], %s375
        %s377 = sand.u32 %s132, 1
        %s378 = smul.addr %s377, 8
        %s379 = scalar_lea.vmem [#allocation9], %s378
        // Predicated region
        $region53: #{tpu_custom_call.1} parent=31 // pred_check
          %p380 = pneg %p142
        $region54: #{tpu_custom_call.1} parent=31 // pred_check_branch
          %382 = sbr.rel (%p380) target = $region56
        $region55: #{tpu_custom_call.1} parent=31 // pred_region
          %s384 = ssub.s32 128, 128
          %385 = vsyncadd %s376, %s384
          %s386 = sadd.s32 %s26, %s27
          %s387 = smul.addr %s386, 128
          %s388 = scalar_lea.hbm %s3, %s387
          %s390 = sshll.u32 %s379, 4
          %s391 = int_to_ptr.vmem [resolvable:$true] %s390
          %393 = dma.vmem_to_hbm [thread:$0]  %s391, 128, %s388, %s376
        $region56: #{tpu_custom_call.1} parent=31 // pred_fallthru
          _
      $region32: #{tpu_custom_call.1} parent=5 // pred_fallthru
        _
      %p394 = scmp.le.s32.totalorder 2, %s16
      // Predicated region
      $region57: #{tpu_custom_call.1} parent=5 // pred_check
        %p395 = pneg %p394
      $region58: #{tpu_custom_call.1} parent=5 // pred_check_branch
        %397 = sbr.rel (%p395) target = $region60
      $region59: #{tpu_custom_call.1} parent=5 // pred_region
        %s398 = ssub.s32 %s16, 2
        // Predicated region
        $region61: #{tpu_custom_call.1} parent=59 // pred_check
          %p399 = pneg %p148
        $region62: #{tpu_custom_call.1} parent=59 // pred_check_branch
          %401 = sbr.rel (%p399) target = $region64
        $region63: #{tpu_custom_call.1} parent=59 // pred_region
          %s402 = sand.u32 %s133, 1
          %s403 = scalar_lea.sflag [#allocation5], %s402
          %s404 = sand.u32 %s133, 1
          %s405 = smul.addr %s404, 8
          %s406 = scalar_lea.vmem [#allocation9], %s405
          %407 = dma.done %s403, 128
        $region64: #{tpu_custom_call.1} parent=59 // pred_fallthru
          _
      $region60: #{tpu_custom_call.1} parent=5 // pred_fallthru
        _
    $region6: #{tpu_custom_call.1} parent=1 // loop_footer
      %s20 = sadd.s32 1, %s16
    $region7: #{tpu_custom_call.1} parent=1 // loop_footer_branch
      %15 = sbr.rel target = $region3
    $region8: #{tpu_custom_call.1} parent=1 // loop_exit
      _
    %408 = vsyncpa [#allocation4], 1
    %s409 = scalar_lea.sflag [#allocation4], 1
    %410 = vsyncpa %s409, 1
    %411 = vsyncpa [#allocation7], 1
    %412 = vsyncpa [#allocation5], 1
    %s413 = scalar_lea.sflag [#allocation5], 1
    %414 = vsyncpa %s413, 1

</llo_original>
